<compile_context>
chip_gen: v5e
topology: v5e:2x2
jax: 0.10.0
libtpu: 0.0.40
codegen_flags: <defaults>
</compile_context>

<pallas_src>
import functools

import jax
import jax.numpy as jnp
from jax.experimental import pallas as pl
from jax.experimental.pallas import tpu as pltpu


def _choose_fold(tile):
    """Largest lane-fold factor f in {4, 2, 1} with tile % (f*128) == 0."""
    for f in (4, 2):
        if tile % (f * 128) == 0:
            return f
    return 1


def _choose_hw_tile(hw, c, itemsize, hw_tile=None,
                    target_block_bytes=4 << 20, budget_bytes=28 << 20):
    """Lane-dense spatial tile (multiple of 128) hitting a ~4 MiB block target
    while keeping 2 pipelined x buffers + folded f32 acc under the VMEM budget."""
    hw128 = pl.cdiv(hw, 128) * 128
    if hw_tile is None:
        tile = (target_block_bytes // (c * itemsize)) // 128 * 128
        tile = int(max(128, min(tile, hw128)))
    else:
        tile = int(max(128, (hw_tile // 128) * 128))

    def vmem_bytes(t):
        return c * t * 2 * itemsize + c * (t // _choose_fold(t)) * 4

    while tile > 128 and vmem_bytes(tile) > budget_bytes:
        tile -= 128
    return tile


def _avgc_kernel(x_ref, w1t_ref, b1_ref, w2t_ref, b2_ref, o_ref, acc_ref, *,
                 hw_total, hw_tile, fold):
    # x_ref:   (1, C, hw_tile)        one batch row, one spatial tile
    # w1t_ref: (C, Cmid)              first 1x1 conv weight, pre-transposed
    # b1_ref:  (1, Cmid)
    # w2t_ref: (Cmid, C)              second 1x1 conv weight, pre-transposed
    # b2_ref:  (1, C)
    # o_ref:   (1, 1, C)              sigmoid attention weights for this row
    # acc_ref: (1, C, hw_tile//fold)  f32 lane-folded partial-sum accumulator
    hw_id = pl.program_id(1)
    num_hw = pl.cdiv(hw_total, hw_tile)        # static (Python int)
    ragged = (hw_total % hw_tile) != 0         # static (Python bool)
    sub = hw_tile // fold

    def fold_load(masked):
        # Load one x tile as f32, optionally mask out-of-range lanes, and fold
        # `fold` lane chunks together -> (1, C, sub).  Slices are static and
        # 128-aligned (pure in-vreg VPU adds).
        if masked or fold == 1:
            x = x_ref[...].astype(jnp.float32)
            if masked:
                lane = jax.lax.broadcasted_iota(jnp.int32, x.shape, dimension=2)
                x = jnp.where(hw_id * hw_tile + lane < hw_total, x, 0.0)
            if fold == 1:
                return x
            xf = x[:, :, 0:sub]
            for f in range(1, fold):
                xf = xf + x[:, :, f * sub:(f + 1) * sub]
            return xf
        xf = x_ref[:, :, 0:sub].astype(jnp.float32)
        for f in range(1, fold):
            xf = xf + x_ref[:, :, f * sub:(f + 1) * sub].astype(jnp.float32)
        return xf

    def fc_sigmoid(pooled):
        # conv_du[0]: 1x1 conv (C -> Cmid) + bias, ReLU
        h = jnp.dot(pooled, w1t_ref[...], preferred_element_type=jnp.float32)
        h = jnp.maximum(h + b1_ref[...], 0.0)                      # (1, Cmid)
        # conv_du[2]: 1x1 conv (Cmid -> C) + bias, Sigmoid
        o = jnp.dot(h, w2t_ref[...], preferred_element_type=jnp.float32)
        o = jax.nn.sigmoid(o + b2_ref[...])                        # (1, C)
        return o[:, None, :].astype(o_ref.dtype)                   # (1, 1, C)

    inv_hw = jnp.float32(1.0 / hw_total)

    if num_hw == 1:
        # Whole row fits one tile: no accumulator round-trip at all.
        pooled = jnp.sum(fold_load(ragged), axis=-1) * inv_hw      # (1, C)
        o_ref[...] = fc_sigmoid(pooled)
        return

    # --- multi-step spatial reduction ---
    @pl.when(hw_id == 0)
    def _first():
        # Assign on first step (first tile is never ragged when num_hw > 1).
        acc_ref[...] = fold_load(False)

    if ragged:
        @pl.when(jnp.logical_and(hw_id > 0, hw_id < num_hw - 1))
        def _mid():
            acc_ref[...] += fold_load(False)        # steady state: no mask

        @pl.when(hw_id == num_hw - 1)
        def _last():
            acc_ref[...] += fold_load(True)         # masked ragged last tile
    else:
        @pl.when(hw_id > 0)
        def _rest():
            acc_ref[...] += fold_load(False)

    @pl.when(hw_id == num_hw - 1)
    def _epilogue():
        # Single deferred cross-lane (XLU) reduce + scalar 1/HW multiply.
        pooled = jnp.sum(acc_ref[...], axis=-1) * inv_hw           # (1, C)
        o_ref[...] = fc_sigmoid(pooled)


def weight_norm(v, g):
    # PyTorch weight_norm with dim=0: norm over all dims except the 0th.
    norm = jnp.sqrt(jnp.sum(v.astype(jnp.float32) ** 2,
                            axis=tuple(range(1, v.ndim)), keepdims=True))
    return g.astype(jnp.float32) * v.astype(jnp.float32) / norm


def avgc_wn_forward(x, params, hw_tile=None):
    """x: (N, C, H, W) float.  Returns y: (N, C, 1, 1) float32."""
    N, C, H, W = x.shape
    v1, g1, b1, v2, g2, b2 = params
    Cmid = v1.shape[0]
    HW = H * W

    # Weight-norm reparameterization (tiny glue, plain JAX).
    w1t = weight_norm(v1, g1).reshape(Cmid, C).T       # (C, Cmid)
    w2t = weight_norm(v2, g2).reshape(C, Cmid).T       # (Cmid, C)
    b1r = b1.reshape(1, Cmid).astype(jnp.float32)
    b2r = b2.reshape(1, C).astype(jnp.float32)

    x_flat = x.reshape(N, C, HW)                       # contiguous -> free
    tile = _choose_hw_tile(HW, C, x.dtype.itemsize, hw_tile)
    fold = _choose_fold(tile)
    num_hw = pl.cdiv(HW, tile)

    kernel = functools.partial(_avgc_kernel, hw_total=HW, hw_tile=tile,
                               fold=fold)

    bytes_accessed = (x_flat.size * x_flat.dtype.itemsize
                      + (w1t.size + w2t.size + Cmid + C) * 4
                      + N * C * 4)
    cost = pl.CostEstimate(
        flops=int(N * C * HW + 4 * N * C * Cmid),
        transcendentals=int(N * C),
        bytes_accessed=int(bytes_accessed))

    out = pl.pallas_call(
        kernel,
        out_shape=jax.ShapeDtypeStruct((N, 1, C), jnp.float32),
        grid_spec=pltpu.PrefetchScalarGridSpec(
            num_scalar_prefetch=0,
            grid=(N, num_hw),                           # reduction axis last
            in_specs=[
                # x tile: large lane-dense spatial chunk; double-buffered.
                pl.BlockSpec((1, C, tile), lambda n, k: (n, 0, k)),
                # Weights/biases: constant block index -> fetched once, resident.
                pl.BlockSpec((C, Cmid), lambda n, k: (0, 0)),
                pl.BlockSpec((1, Cmid), lambda n, k: (0, 0)),
                pl.BlockSpec((Cmid, C), lambda n, k: (0, 0)),
                pl.BlockSpec((1, C), lambda n, k: (0, 0)),
            ],
            out_specs=pl.BlockSpec((1, 1, C), lambda n, k: (n, 0, 0)),
            scratch_shapes=[pltpu.VMEM((1, C, tile // fold), jnp.float32)],
        ),
        compiler_params=pltpu.CompilerParams(
            dimension_semantics=("parallel", "arbitrary"),
            vmem_limit_bytes=40 * 1024 * 1024),
        cost_estimate=cost,
    )(x_flat, w1t, b1r, w2t, b2r)

    return out.reshape(N, C, 1, 1)


def init_params(key, channel, reduction):
    cmid = channel // reduction
    k = jax.random.split(key, 6)
    # conv1: Conv2d(channel -> cmid, 1x1, bias=True), weight-normed
    v1 = jax.random.normal(k[0], (cmid, channel, 1, 1), jnp.float32) * 0.1
    g1 = jax.random.normal(k[1], (cmid, 1, 1, 1), jnp.float32) * 0.1 + 1.0
    b1 = jax.random.normal(k[2], (cmid,), jnp.float32) * 0.1
    # conv2: Conv2d(cmid -> channel, 1x1, bias=True), weight-normed
    v2 = jax.random.normal(k[3], (channel, cmid, 1, 1), jnp.float32) * 0.1
    g2 = jax.random.normal(k[4], (channel, 1, 1, 1), jnp.float32) * 0.1 + 1.0
    b2 = jax.random.normal(k[5], (channel,), jnp.float32) * 0.1
    return (v1, g1, b1, v2, g2, b2)


def reference_forward(x, params):
    """Pure-JAX reference mirroring the PyTorch module."""
    v1, g1, b1, v2, g2, b2 = params
    C = x.shape[1]
    Cmid = v1.shape[0]
    w1 = weight_norm(v1, g1).reshape(Cmid, C)
    w2 = weight_norm(v2, g2).reshape(C, Cmid)
    y = jnp.mean(x, axis=(2, 3))                       # (N, C)
    y = jnp.maximum(y @ w1.T + b1, 0.0)                # (N, Cmid)
    y = jax.nn.sigmoid(y @ w2.T + b2)                  # (N, C)
    return y[:, :, None, None]


if __name__ == "__main__":
    key = jax.random.PRNGKey(0)
    kx, kp, kx2, kp2, kx3, kp3, kx4, kp4 = jax.random.split(key, 8)

    # Case 1: channel=32, reduction=4, HW=256.
    #   hw_tile=128 -> 2-step reduction grid; None -> single folded tile.
    N, C, H, W = 2, 32, 16, 16
    x = jax.random.normal(kx, (N, C, H, W), jnp.float32)
    params = init_params(kp, C, 4)
    y_ref = reference_forward(x, params)
    for hw_tile in (128, None):
        y = jax.block_until_ready(avgc_wn_forward(x, params, hw_tile=hw_tile))
        assert y.shape == (N, C, 1, 1), y.shape
        assert jnp.allclose(y, y_ref, atol=1e-5, rtol=1e-5), (
            float(jnp.max(jnp.abs(y - y_ref))))

    # Case 2: ragged last spatial tile (HW=320, 128-wide tiles -> masked last).
    N2, C2, H2, W2 = 2, 16, 16, 20
    x2 = jax.random.normal(kx2, (N2, C2, H2, W2), jnp.float32)
    params2 = init_params(kp2, C2, 4)
    y2 = jax.block_until_ready(avgc_wn_forward(x2, params2, hw_tile=128))
    y2_ref = reference_forward(x2, params2)
    assert y2.shape == (N2, C2, 1, 1), y2.shape
    assert jnp.allclose(y2, y2_ref, atol=1e-5, rtol=1e-5), (
        float(jnp.max(jnp.abs(y2 - y2_ref))))

    # Case 3: multi-step reduction with a 4-way lane-folded accumulator
    # (HW=1024, tile=512 -> 2 steps, fold=4).
    N3, C3, H3, W3 = 2, 32, 32, 32
    x3 = jax.random.normal(kx3, (N3, C3, H3, W3), jnp.float32)
    params3 = init_params(kp3, C3, 8)
    y3 = jax.block_until_ready(avgc_wn_forward(x3, params3, hw_tile=512))
    y3_ref = reference_forward(x3, params3)
    assert jnp.allclose(y3, y3_ref, atol=1e-5, rtol=1e-5), (
        float(jnp.max(jnp.abs(y3 - y3_ref))))

    # Case 4: HW < 128 -> single tile that is also the ragged (masked) tile.
    N4, C4, H4, W4 = 2, 16, 8, 8
    x4 = jax.random.normal(kx4, (N4, C4, H4, W4), jnp.float32)
    params4 = init_params(kp4, C4, 4)
    y4 = jax.block_until_ready(avgc_wn_forward(x4, params4))
    y4_ref = reference_forward(x4, params4)
    assert jnp.allclose(y4, y4_ref, atol=1e-5, rtol=1e-5), (
        float(jnp.max(jnp.abs(y4 - y4_ref))))

    print("KERNEL_OK")
</pallas_src>

<mosaic_0001>
module attributes {stable_mosaic.version = 11 : i64} {
  func.func @_avgc_kernel(%arg0: i32, %arg1: i32, %arg2: memref<1x32x128xf32, #tpu.memory_space<vmem>>, %arg3: memref<32x8xf32, #tpu.memory_space<vmem>>, %arg4: memref<1x8xf32, #tpu.memory_space<vmem>>, %arg5: memref<8x32xf32, #tpu.memory_space<vmem>>, %arg6: memref<1x32xf32, #tpu.memory_space<vmem>>, %arg7: memref<1x1x32xf32, #tpu.memory_space<vmem>>, %arg8: memref<1x32x128xf32, #tpu.memory_space<vmem>>) attributes {dimension_semantics = [#tpu.dimension_semantics<parallel>, #tpu.dimension_semantics<arbitrary>], iteration_bounds = array<i64: 2, 2>, scalar_prefetch = 0 : i64, scratch_operands = 1 : i64, tpu.core_type = #tpu.core_type<tc>, window_params = [{transform_indices = @transform_0, window_bounds = array<i64: 1, 32, 128>}, {pipeline_mode = #tpu.pipeline_mode<synchronous>, transform_indices = @transform_1, window_bounds = array<i64: 32, 8>}, {pipeline_mode = #tpu.pipeline_mode<synchronous>, transform_indices = @transform_2, window_bounds = array<i64: 1, 8>}, {pipeline_mode = #tpu.pipeline_mode<synchronous>, transform_indices = @transform_3, window_bounds = array<i64: 8, 32>}, {pipeline_mode = #tpu.pipeline_mode<synchronous>, transform_indices = @transform_4, window_bounds = array<i64: 1, 32>}, {transform_indices = @transform_5, window_bounds = array<i64: 1, 1, 32>}]} {
    %c0_i32 = arith.constant 0 : i32
    %0 = arith.cmpi eq, %arg1, %c0_i32 : i32
    %1 = arith.extui %0 : i1 to i32
    %c0_i32_0 = arith.constant 0 : i32
    %2 = arith.cmpi ne, %1, %c0_i32_0 : i32
    scf.if %2 {
      %c0 = arith.constant 0 : index
      %c0_4 = arith.constant 0 : index
      %c0_5 = arith.constant 0 : index
      %9 = vector.load %arg2[%c0, %c0_4, %c0_5] : memref<1x32x128xf32, #tpu.memory_space<vmem>>, vector<1x32x128xf32>
      %c0_6 = arith.constant 0 : index
      %c0_7 = arith.constant 0 : index
      %c0_8 = arith.constant 0 : index
      %10 = vector.load %arg8[%c0_6, %c0_7, %c0_8] : memref<1x32x128xf32, #tpu.memory_space<vmem>>, vector<1x32x128xf32>
      tpu.vector_store %arg8[%c0_6, %c0_7, %c0_8], %9 {strides = array<i32>} : memref<1x32x128xf32, #tpu.memory_space<vmem>>, vector<1x32x128xf32>,
    } else {
    }
    %c0_i32_1 = arith.constant 0 : i32
    %3 = arith.cmpi sgt, %arg1, %c0_i32_1 : i32
    %4 = arith.extui %3 : i1 to i32
    %c0_i32_2 = arith.constant 0 : i32
    %5 = arith.cmpi ne, %4, %c0_i32_2 : i32
    scf.if %5 {
      %c0 = arith.constant 0 : index
      %c0_4 = arith.constant 0 : index
      %c0_5 = arith.constant 0 : index
      %9 = vector.load %arg8[%c0, %c0_4, %c0_5] : memref<1x32x128xf32, #tpu.memory_space<vmem>>, vector<1x32x128xf32>
      %c0_6 = arith.constant 0 : index
      %c0_7 = arith.constant 0 : index
      %c0_8 = arith.constant 0 : index
      %10 = vector.load %arg2[%c0_6, %c0_7, %c0_8] : memref<1x32x128xf32, #tpu.memory_space<vmem>>, vector<1x32x128xf32>
      %11 = arith.addf %9, %10 : vector<1x32x128xf32>
      %c0_9 = arith.constant 0 : index
      %c0_10 = arith.constant 0 : index
      %c0_11 = arith.constant 0 : index
      %12 = vector.load %arg8[%c0_9, %c0_10, %c0_11] : memref<1x32x128xf32, #tpu.memory_space<vmem>>, vector<1x32x128xf32>
      tpu.vector_store %arg8[%c0_9, %c0_10, %c0_11], %11 {strides = array<i32>} : memref<1x32x128xf32, #tpu.memory_space<vmem>>, vector<1x32x128xf32>,
    } else {
    }
    %c1_i32 = arith.constant 1 : i32
    %6 = arith.cmpi eq, %arg1, %c1_i32 : i32
    %7 = arith.extui %6 : i1 to i32
    %cst = arith.constant 3.906250e-03 : f32
    %c0_i32_3 = arith.constant 0 : i32
    %8 = arith.cmpi ne, %7, %c0_i32_3 : i32
    scf.if %8 {
      %c0 = arith.constant 0 : index
      %c0_4 = arith.constant 0 : index
      %c0_5 = arith.constant 0 : index
      %9 = vector.load %arg8[%c0, %c0_4, %c0_5] : memref<1x32x128xf32, #tpu.memory_space<vmem>>, vector<1x32x128xf32>
      %cst_6 = arith.constant dense<0.000000e+00> : vector<1x32xf32>
      %10 = vector.multi_reduction <add>, %9, %cst_6 [2] : vector<1x32x128xf32> to vector<1x32xf32>
      %11 = vector.broadcast %cst : f32 to vector<1x32xf32>
      %12 = arith.mulf %10, %11 : vector<1x32xf32>
      %c0_7 = arith.constant 0 : index
      %c0_8 = arith.constant 0 : index
      %13 = vector.load %arg3[%c0_7, %c0_8] : memref<32x8xf32, #tpu.memory_space<vmem>>, vector<32x8xf32>
      %cst_9 = arith.constant dense<0.000000e+00> : vector<1x8xf32>
      %14 = tpu.matmul %12, %13, %cst_9 {dimension_numbers = #tpu.dot_dimension_numbers<[1], [0], [0], [1], [0, 0, 1, 1], [], []>} : vector<1x32xf32>, vector<32x8xf32>, vector<1x8xf32> -> vector<1x8xf32>
      %c0_10 = arith.constant 0 : index
      %c0_11 = arith.constant 0 : index
      %15 = vector.load %arg4[%c0_10, %c0_11] : memref<1x8xf32, #tpu.memory_space<vmem>>, vector<1x8xf32>
      %16 = arith.addf %14, %15 : vector<1x8xf32>
      %cst_12 = arith.constant 0.000000e+00 : f32
      %17 = vector.broadcast %cst_12 : f32 to vector<1x8xf32>
      %18 = arith.maximumf %16, %17 : vector<1x8xf32>
      %c0_13 = arith.constant 0 : index
      %c0_14 = arith.constant 0 : index
      %19 = vector.load %arg5[%c0_13, %c0_14] : memref<8x32xf32, #tpu.memory_space<vmem>>, vector<8x32xf32>
      %cst_15 = arith.constant dense<0.000000e+00> : vector<1x32xf32>
      %20 = tpu.matmul %18, %19, %cst_15 {dimension_numbers = #tpu.dot_dimension_numbers<[1], [0], [0], [1], [0, 0, 1, 1], [], []>} : vector<1x8xf32>, vector<8x32xf32>, vector<1x32xf32> -> vector<1x32xf32>
      %c0_16 = arith.constant 0 : index
      %c0_17 = arith.constant 0 : index
      %21 = vector.load %arg6[%c0_16, %c0_17] : memref<1x32xf32, #tpu.memory_space<vmem>>, vector<1x32xf32>
      %22 = arith.addf %20, %21 : vector<1x32xf32>
      %23 = arith.negf %22 : vector<1x32xf32>
      %24 = math.exp %23 : vector<1x32xf32>
      %cst_18 = arith.constant 1.000000e+00 : f32
      %25 = vector.broadcast %cst_18 : f32 to vector<1x32xf32>
      %26 = arith.addf %25, %24 : vector<1x32xf32>
      %27 = arith.divf %25, %26 : vector<1x32xf32>
      %28 = vector.shape_cast %27 : vector<1x32xf32> to vector<1x1x32xf32>
      %c0_19 = arith.constant 0 : index
      %c0_20 = arith.constant 0 : index
      %c0_21 = arith.constant 0 : index
      %29 = vector.load %arg7[%c0_19, %c0_20, %c0_21] : memref<1x1x32xf32, #tpu.memory_space<vmem>>, vector<1x1x32xf32>
      tpu.vector_store %arg7[%c0_19, %c0_20, %c0_21], %28 {strides = array<i32>} : memref<1x1x32xf32, #tpu.memory_space<vmem>>, vector<1x1x32xf32>,
    } else {
    }
    return
  }
  func.func @transform_0(%arg0: i32, %arg1: i32) -> (i32, i32, i32) {
    %c0_i32 = arith.constant 0 : i32
    %c0_i32_0 = arith.constant 0 : i32
    return %arg0, %c0_i32, %arg1 : i32, i32, i32
  }
  func.func @transform_1(%arg0: i32, %arg1: i32) -> (i32, i32) {
    %c0_i32 = arith.constant 0 : i32
    %c0_i32_0 = arith.constant 0 : i32
    %c0_i32_1 = arith.constant 0 : i32
    return %c0_i32, %c0_i32_0 : i32, i32
  }
  func.func @transform_2(%arg0: i32, %arg1: i32) -> (i32, i32) {
    %c0_i32 = arith.constant 0 : i32
    %c0_i32_0 = arith.constant 0 : i32
    %c0_i32_1 = arith.constant 0 : i32
    return %c0_i32, %c0_i32_0 : i32, i32
  }
  func.func @transform_3(%arg0: i32, %arg1: i32) -> (i32, i32) {
    %c0_i32 = arith.constant 0 : i32
    %c0_i32_0 = arith.constant 0 : i32
    %c0_i32_1 = arith.constant 0 : i32
    return %c0_i32, %c0_i32_0 : i32, i32
  }
  func.func @transform_4(%arg0: i32, %arg1: i32) -> (i32, i32) {
    %c0_i32 = arith.constant 0 : i32
    %c0_i32_0 = arith.constant 0 : i32
    %c0_i32_1 = arith.constant 0 : i32
    return %c0_i32, %c0_i32_0 : i32, i32
  }
  func.func @transform_5(%arg0: i32, %arg1: i32) -> (i32, i32, i32) {
    %c0_i32 = arith.constant 0 : i32
    %c0_i32_0 = arith.constant 0 : i32
    %c0_i32_1 = arith.constant 0 : i32
    return %arg0, %c0_i32, %c0_i32_0 : i32, i32, i32
  }
}

</mosaic_0001>

<llo_original>
// kernel: tpu_custom_call.1
$region0: #{tpu_custom_call.1}
  #allocation0 [shape = 'u32[]', space=smem, size = 0x4, offset = 0x4, fixed_abs, tag = 'smem constant byte address 0x4 - core index']
  #allocation1 [shape = 'u32[72,128]{1,0:T(1,128)}', space=vmem, size = 0x9000, scoped, tag = 'internal scratch']
  #allocation2 [shape = 'f32[1,32,128]{2,1,0:T(8,128)}', space=vmem, size = 0x4000, scoped, tag = 'scratch operand']
  %s0 = inlined_call_operand.hbm [shape: f32[2,32,256], index: 0, kind: input, shape index: {}]
  %s1 = inlined_call_operand.vmem [shape: f32[32,8], index: 1, kind: input, shape index: {}]
  %s2 = inlined_call_operand.vmem [shape: f32[1,8], index: 2, kind: input, shape index: {}]
  %s3 = inlined_call_operand.vmem [shape: f32[8,32], index: 3, kind: input, shape index: {}]
  %s4 = inlined_call_operand.vmem [shape: f32[1,32], index: 4, kind: input, shape index: {}]
  %s5 = inlined_call_operand.hbm [shape: f32[2,1,32], index: 5, kind: output, shape index: {}]
  %s6 = sld [smem:[#allocation0]]
  $region69: #{tpu_custom_call.1} parent=0
    _
  %s8 = ssub.s32 1, %s6
  %s9 = scalar_select 0, %s8, %s6
  $region1: #{tpu_custom_call.1} parent=0
    #allocation3 [shape = 'u8[32768]{0}', space=vmem, size = 0x8000, scoped, tag = 'input window, operand 0']
    #allocation4 [shape = 's32[2]{0}', space=sflag, size = 0x8, scoped, tag = 'scoped memory for tpu_custom_call.1']
    #allocation5 [shape = 's32[2]{0}', space=sflag, size = 0x8, scoped, tag = 'scoped memory for tpu_custom_call.1']
    #allocation6 [shape = 'u8[1024]{0}', space=vmem, size = 0x400, scoped, tag = 'output window, operand 0']
    %10 = vsyncpa [#allocation4], 0
    %s11 = scalar_lea.sflag [#allocation4], 1
    %12 = vsyncpa %s11, 0
    %13 = vsyncpa [#allocation5], 0
    %s14 = scalar_lea.sflag [#allocation5], 1
    %15 = vsyncpa %s14, 0
    loop: start=0, step=1, limit=6
    $region2: #{tpu_custom_call.1} parent=1 // loop_pre_header
      _
    $region3: #{tpu_custom_call.1} parent=1 // loop_header
      %s17 = sphi 0, %s21
      %p18 = scmp.ge.s32.totalorder %s17, 6
      %s24 = sphi 0, %s36
      %s25 = sphi 0, %s32
      %s26 = sphi 0, %s24
      %s27 = sphi 0, %s25
      %s28 = sphi 0, %s26
      %s29 = sphi 0, %s27
      %s41 = sphi 0, %s43
      %s44 = sphi 0, %s41
      %s45 = sphi 0, %s44
      %s61 = sphi 0, %s45
      %s65 = sphi 0, %s65
      %s67 = sphi 0, %s65
      %s68 = sphi 0, %s67
      %s82 = sphi 0, %s68
      %s86 = sphi 0, %s86
      %s88 = sphi 0, %s86
      %s89 = sphi 0, %s88
      %s103 = sphi 0, %s89
      %s107 = sphi 0, %s107
      %s109 = sphi 0, %s107
      %s110 = sphi 0, %s109
      %s124 = sphi 0, %s110
      %s128 = sphi 0, %s128
      %s130 = sphi 0, %s128
      %s131 = sphi 0, %s130
      %s145 = sphi 0, %s131
      %s151 = sphi 0, %s153
      %s154 = sphi 0, %s151
      %s155 = sphi 0, %s154
      %s171 = sphi 0, %s155
    $region4: #{tpu_custom_call.1} parent=1 // loop_header_branch
      %20 = sbr.rel (%p18) target = $region8
    $region5: #{tpu_custom_call.1} parent=1 // loop_body
      %s22 = ssub.s32 %s17, 1
      %s23 = ssub.s32 %s17, 2
      %s30 = sadd.s32 1, %s25
      %p31 = scmp.ge.s32.totalorder %s30, 2
      %s32 = scalar_select %p31, 0, %s30
      %s33 = sadd.s32 1, %s24
      %s34 = scalar_select %p31, %s33, %s24
      %p35 = scmp.ge.s32.totalorder %s34, 2
      %s36 = scalar_select %p35, 0, %s34
      %s37 = ssub.s32 %s24, %s36
      %s38 = ssub.s32 %s25, %s32
      %s39 = sor.u32 %s37, %s38
      %p40 = scmp.eq.s32.totalorder %s39, 0
      %s42 = sadd.s32 %s41, 1
      %s43 = scalar_select %p40, %s41, %s42
      %p46 = pneg %p40
      %p47 = scmp.eq.s32.totalorder %s17, 3
      %p48 = por %p46, %p47
      %p49 = scmp.ne.s32.totalorder %s41, %s44
      %p50 = scmp.eq.s32.totalorder %s17, 0
      %p51 = por %p49, %p50
      %p52 = scmp.ne.s32.totalorder %s41, %s44
      %p53 = scmp.eq.s32.totalorder %s22, 3
      %p54 = por %p52, %p53
      %p55 = scmp.ne.s32.totalorder %s44, %s45
      %p56 = scmp.eq.s32.totalorder %s22, 0
      %p57 = por %p55, %p56
      %p58 = scmp.ne.s32.totalorder %s44, %s45
      %p59 = scmp.eq.s32.totalorder %s23, 3
      %p60 = por %p58, %p59
      %p62 = scmp.ne.s32.totalorder %s45, %s61
      %p63 = scmp.eq.s32.totalorder %s23, 0
      %p64 = por %p62, %p63
      %s66 = sadd.s32 %s65, 1
      %p69 = scmp.eq.s32.totalorder %s17, 3
      %p70 = scmp.ne.s32.totalorder %s65, %s67
      %p71 = scmp.eq.s32.totalorder %s17, 0
      %p72 = por %p70, %p71
      %p73 = scmp.ne.s32.totalorder %s65, %s67
      %p74 = scmp.eq.s32.totalorder %s22, 3
      %p75 = por %p73, %p74
      %p76 = scmp.ne.s32.totalorder %s67, %s68
      %p77 = scmp.eq.s32.totalorder %s22, 0
      %p78 = por %p76, %p77
      %p79 = scmp.ne.s32.totalorder %s67, %s68
      %p80 = scmp.eq.s32.totalorder %s23, 3
      %p81 = por %p79, %p80
      %p83 = scmp.ne.s32.totalorder %s68, %s82
      %p84 = scmp.eq.s32.totalorder %s23, 0
      %p85 = por %p83, %p84
      %s87 = sadd.s32 %s86, 1
      %p90 = scmp.eq.s32.totalorder %s17, 3
      %p91 = scmp.ne.s32.totalorder %s86, %s88
      %p92 = scmp.eq.s32.totalorder %s17, 0
      %p93 = por %p91, %p92
      %p94 = scmp.ne.s32.totalorder %s86, %s88
      %p95 = scmp.eq.s32.totalorder %s22, 3
      %p96 = por %p94, %p95
      %p97 = scmp.ne.s32.totalorder %s88, %s89
      %p98 = scmp.eq.s32.totalorder %s22, 0
      %p99 = por %p97, %p98
      %p100 = scmp.ne.s32.totalorder %s88, %s89
      %p101 = scmp.eq.s32.totalorder %s23, 3
      %p102 = por %p100, %p101
      %p104 = scmp.ne.s32.totalorder %s89, %s103
      %p105 = scmp.eq.s32.totalorder %s23, 0
      %p106 = por %p104, %p105
      %s108 = sadd.s32 %s107, 1
      %p111 = scmp.eq.s32.totalorder %s17, 3
      %p112 = scmp.ne.s32.totalorder %s107, %s109
      %p113 = scmp.eq.s32.totalorder %s17, 0
      %p114 = por %p112, %p113
      %p115 = scmp.ne.s32.totalorder %s107, %s109
      %p116 = scmp.eq.s32.totalorder %s22, 3
      %p117 = por %p115, %p116
      %p118 = scmp.ne.s32.totalorder %s109, %s110
      %p119 = scmp.eq.s32.totalorder %s22, 0
      %p120 = por %p118, %p119
      %p121 = scmp.ne.s32.totalorder %s109, %s110
      %p122 = scmp.eq.s32.totalorder %s23, 3
      %p123 = por %p121, %p122
      %p125 = scmp.ne.s32.totalorder %s110, %s124
      %p126 = scmp.eq.s32.totalorder %s23, 0
      %p127 = por %p125, %p126
      %s129 = sadd.s32 %s128, 1
      %p132 = scmp.eq.s32.totalorder %s17, 3
      %p133 = scmp.ne.s32.totalorder %s128, %s130
      %p134 = scmp.eq.s32.totalorder %s17, 0
      %p135 = por %p133, %p134
      %p136 = scmp.ne.s32.totalorder %s128, %s130
      %p137 = scmp.eq.s32.totalorder %s22, 3
      %p138 = por %p136, %p137
      %p139 = scmp.ne.s32.totalorder %s130, %s131
      %p140 = scmp.eq.s32.totalorder %s22, 0
      %p141 = por %p139, %p140
      %p142 = scmp.ne.s32.totalorder %s130, %s131
      %p143 = scmp.eq.s32.totalorder %s23, 3
      %p144 = por %p142, %p143
      %p146 = scmp.ne.s32.totalorder %s131, %s145
      %p147 = scmp.eq.s32.totalorder %s23, 0
      %p148 = por %p146, %p147
      %s149 = ssub.s32 %s24, %s36
      %p150 = scmp.eq.s32.totalorder %s149, 0
      %s152 = sadd.s32 %s151, 1
      %s153 = scalar_select %p150, %s151, %s152
      %p156 = pneg %p150
      %p157 = scmp.eq.s32.totalorder %s17, 3
      %p158 = por %p156, %p157
      %p159 = scmp.ne.s32.totalorder %s151, %s154
      %p160 = scmp.eq.s32.totalorder %s17, 0
      %p161 = por %p159, %p160
      %p162 = scmp.ne.s32.totalorder %s151, %s154
      %p163 = scmp.eq.s32.totalorder %s22, 3
      %p164 = por %p162, %p163
      %p165 = scmp.ne.s32.totalorder %s154, %s155
      %p166 = scmp.eq.s32.totalorder %s22, 0
      %p167 = por %p165, %p166
      %p168 = scmp.ne.s32.totalorder %s154, %s155
      %p169 = scmp.eq.s32.totalorder %s23, 3
      %p170 = por %p168, %p169
      %p172 = scmp.ne.s32.totalorder %s155, %s171
      %p173 = scmp.eq.s32.totalorder %s23, 0
      %p174 = por %p172, %p173
      %p175 = scmp.le.s32.totalorder 1, %s17
      %p176 = scmp.lt.s32.totalorder %s17, 5
      %p177 = pnand %p175, %p176
      %p178 = pneg %p177
      // Predicated region
      $region9: #{tpu_custom_call.1} parent=5 // pred_check
        _
      $region10: #{tpu_custom_call.1} parent=5 // pred_check_branch
        %180 = sbr.rel (%p177) target = $region12
      $region11: #{tpu_custom_call.1} parent=5 // pred_region
        %s181 = ssub.s32 %s17, 1
        // Predicated region
        $region13: #{tpu_custom_call.1} parent=11 // pred_check
          %p182 = pneg %p78
        $region14: #{tpu_custom_call.1} parent=11 // pred_check_branch
          %184 = sbr.rel (%p182) target = $region16
        $region15: #{tpu_custom_call.1} parent=11 // pred_region
          _
        $region16: #{tpu_custom_call.1} parent=11 // pred_fallthru
          _
        // Predicated region
        $region17: #{tpu_custom_call.1} parent=11 // pred_check
          %p185 = pneg %p99
        $region18: #{tpu_custom_call.1} parent=11 // pred_check_branch
          %187 = sbr.rel (%p185) target = $region20
        $region19: #{tpu_custom_call.1} parent=11 // pred_region
          _
        $region20: #{tpu_custom_call.1} parent=11 // pred_fallthru
          _
        // Predicated region
        $region21: #{tpu_custom_call.1} parent=11 // pred_check
          %p188 = pneg %p120
        $region22: #{tpu_custom_call.1} parent=11 // pred_check_branch
          %190 = sbr.rel (%p188) target = $region24
        $region23: #{tpu_custom_call.1} parent=11 // pred_region
          _
        $region24: #{tpu_custom_call.1} parent=11 // pred_fallthru
          _
        // Predicated region
        $region25: #{tpu_custom_call.1} parent=11 // pred_check
          %p191 = pneg %p141
        $region26: #{tpu_custom_call.1} parent=11 // pred_check_branch
          %193 = sbr.rel (%p191) target = $region28
        $region27: #{tpu_custom_call.1} parent=11 // pred_region
          _
        $region28: #{tpu_custom_call.1} parent=11 // pred_fallthru
          _
      $region12: #{tpu_custom_call.1} parent=5 // pred_fallthru
        _
      %p194 = scmp.lt.s32.totalorder %s17, 4
      // Predicated region
      $region29: #{tpu_custom_call.1} parent=5 // pred_check
        %p195 = pneg %p194
      $region30: #{tpu_custom_call.1} parent=5 // pred_check_branch
        %197 = sbr.rel (%p195) target = $region32
      $region31: #{tpu_custom_call.1} parent=5 // pred_region
        // Predicated region
        $region33: #{tpu_custom_call.1} parent=31 // pred_check
          %p198 = pneg %p51
        $region34: #{tpu_custom_call.1} parent=31 // pred_check_branch
          %200 = sbr.rel (%p198) target = $region36
        $region35: #{tpu_custom_call.1} parent=31 // pred_region
          %s201 = sand.u32 %s41, 1
          %s202 = scalar_lea.sflag [#allocation4], %s201
          %s203 = sand.u32 %s41, 1
          %s204 = smul.addr %s203, 32
          %s205 = scalar_lea.vmem [#allocation3], %s204
          %207 = vsyncadd %s202, 0
          %s208 = smul.addr %s24, 8
          %s209 = sadd.s32 %s25, %s208
          %s210 = smul.addr %s209, 8
          %s211 = scalar_lea.hbm %s0, %s210
          %s212 = sshll.u32 %s211, 4
          %s213 = int_to_ptr.hbm [resolvable:$true] %s212
          %s214 = sshll.u32 %s205, 4
          %s215 = int_to_ptr.vmem [resolvable:$true] %s214
          %220 = dma.hbm_to_vmem [thread:$0]  %s213, 512, %s215, %s202, 256, 128, 8
        $region36: #{tpu_custom_call.1} parent=31 // pred_fallthru
          _
      $region32: #{tpu_custom_call.1} parent=5 // pred_fallthru
        _
      %p221 = scmp.le.s32.totalorder 1, %s17
      %p222 = scmp.lt.s32.totalorder %s17, 5
      %p223 = pnand %p221, %p222
      %p224 = pneg %p223
      // Predicated region
      $region37: #{tpu_custom_call.1} parent=5 // pred_check
        _
      $region38: #{tpu_custom_call.1} parent=5 // pred_check_branch
        %226 = sbr.rel (%p223) target = $region40
      $region39: #{tpu_custom_call.1} parent=5 // pred_region
        %s227 = ssub.s32 %s17, 1
        %s228 = sand.u32 %s44, 1
        %s229 = scalar_lea.sflag [#allocation4], %s228
        %s230 = sand.u32 %s44, 1
        %s231 = smul.addr %s230, 32
        %s232 = scalar_lea.vmem [#allocation3], %s231
        // Predicated region
        $region41: #{tpu_custom_call.1} parent=39 // pred_check
          %p233 = pneg %p57
        $region42: #{tpu_custom_call.1} parent=39 // pred_check_branch
          %235 = sbr.rel (%p233) target = $region44
        $region43: #{tpu_custom_call.1} parent=39 // pred_region
          %237 = dma.done %s229, 512
        $region44: #{tpu_custom_call.1} parent=39 // pred_fallthru
          _
        %s238 = sand.u32 %s44, 1
        %s239 = scalar_lea.sflag [#allocation4], %s238
        %s240 = sand.u32 %s44, 1
        %s241 = smul.addr %s240, 32
        %s242 = scalar_lea.vmem [#allocation3], %s241
        %p243 = pneg %p57
        %p244 = pneg %p54
        %p245 = pneg %p78
        %p246 = pneg %p75
        %p247 = pneg %p99
        %p248 = pneg %p96
        %p249 = pneg %p120
        %p250 = pneg %p117
        %p251 = pneg %p141
        %p252 = pneg %p138
        %p253 = pneg %p167
        %p254 = pneg %p164
        %s255 = sand.u32 %s154, 1
        %s256 = scalar_lea.sflag [#allocation5], %s255
        %s257 = sand.u32 %s154, 1
        %s258 = scalar_lea.vmem [#allocation6], %s257
        %p259 = scmp.eq.s32.totalorder %s27, 0
        // Predicated region
        $region45: #{tpu_custom_call.1} parent=39 // pred_check
          %p260 = pneg %p259
        $region46: #{tpu_custom_call.1} parent=39 // pred_check_branch
          %262 = sbr.rel (%p260) target = $region48
        $region47: #{tpu_custom_call.1} parent=39 // pred_region
          %v263 = vld [vmem:[%s232] sm:$0xff]
          %v264 = vld [vmem:[%s232 + $0x8] sm:$0xff]
          %v265 = vld [vmem:[%s232 + $0x10] sm:$0xff]
          %v266 = vld [vmem:[%s232 + $0x18] sm:$0xff]
          %267 = vst [vmem:[#allocation2] sm:$0xff] %v263
          %268 = vst [vmem:[#allocation2 + $0x8] sm:$0xff] %v264
          %269 = vst [vmem:[#allocation2 + $0x10] sm:$0xff] %v265
          %270 = vst [vmem:[#allocation2 + $0x18] sm:$0xff] %v266
        $region48: #{tpu_custom_call.1} parent=39 // pred_fallthru
          _
        %p271 = scmp.gt.s32.totalorder %s27, 0
        // Predicated region
        $region49: #{tpu_custom_call.1} parent=39 // pred_check
          %p272 = pneg %p271
        $region50: #{tpu_custom_call.1} parent=39 // pred_check_branch
          %274 = sbr.rel (%p272) target = $region52
        $region51: #{tpu_custom_call.1} parent=39 // pred_region
          %v275 = vld [vmem:[#allocation2] sm:$0xff]
          %v276 = vld [vmem:[#allocation2 + $0x8] sm:$0xff]
          %v277 = vld [vmem:[#allocation2 + $0x10] sm:$0xff]
          %v278 = vld [vmem:[#allocation2 + $0x18] sm:$0xff]
          %v279 = vld [vmem:[%s232] sm:$0xff]
          %v280 = vld [vmem:[%s232 + $0x8] sm:$0xff]
          %v281 = vld [vmem:[%s232 + $0x10] sm:$0xff]
          %v282 = vld [vmem:[%s232 + $0x18] sm:$0xff]
          %v283 = vadd.f32 %v275, %v279
          %v284 = vadd.f32 %v276, %v280
          %v285 = vadd.f32 %v277, %v281
          %v286 = vadd.f32 %v278, %v282
          %287 = vst [vmem:[#allocation2] sm:$0xff] %v283
          %288 = vst [vmem:[#allocation2 + $0x8] sm:$0xff] %v284
          %289 = vst [vmem:[#allocation2 + $0x10] sm:$0xff] %v285
          %290 = vst [vmem:[#allocation2 + $0x18] sm:$0xff] %v286
        $region52: #{tpu_custom_call.1} parent=39 // pred_fallthru
          _
        %p291 = scmp.eq.s32.totalorder %s27, 1
        // Predicated region
        $region53: #{tpu_custom_call.1} parent=39 // pred_check
          %p292 = pneg %p291
        $region54: #{tpu_custom_call.1} parent=39 // pred_check_branch
          %294 = sbr.rel (%p292) target = $region56
        $region55: #{tpu_custom_call.1} parent=39 // pred_region
          %v295 = vld [vmem:[#allocation2] sm:$0xff]
          %v296 = vld [vmem:[#allocation2 + $0x8] sm:$0xff]
          %v297 = vld [vmem:[#allocation2 + $0x10] sm:$0xff]
          %v298 = vld [vmem:[#allocation2 + $0x18] sm:$0xff]
          %299 = vadd.xlane.f32.xlu0 %v295
          %v300 = vpop.xlane.xlu0 %299
          %301 = vadd.xlane.f32.xlu0 %v296
          %v302 = vpop.xlane.xlu0 %301
          %303 = vadd.xlane.f32.xlu0 %v297
          %v304 = vpop.xlane.xlu0 %303
          %305 = vadd.xlane.f32.xlu0 %v298
          %v306 = vpop.xlane.xlu0 %305
          %v307 = vmul.f32 %v300, 0.00390625
          %v308 = vmul.f32 %v302, 0.00390625
          %v309 = vmul.f32 %v304, 0.00390625
          %v310 = vmul.f32 %v306, 0.00390625
          %v311 = vld [vmem:[%s1] sm:$0xff]
          %v312 = vld [vmem:[%s1 + $0x8] sm:$0xff]
          %v313 = vld [vmem:[%s1 + $0x10] sm:$0xff]
          %v314 = vld [vmem:[%s1 + $0x18] sm:$0xff]
          %v315 = vld [vmem:[%s2] sm:$0x1]
          %v320 = vlaneseq
          %v321 = vand.u32 %v320, 127
          %v322 = vperm.slane %v307, %v321
          %v323 = vadd.s32 %v321, 4294967288
          %v324 = vperm.slane %v308, %v323
          %vm325 = vcmask 130112
          %v326 = vsel %vm325, %v324, %v322
          %v327 = vadd.s32 %v321, 4294967280
          %v328 = vperm.slane %v309, %v327
          %vm329 = vcmask 195712
          %v330 = vsel %vm329, %v328, %v326
          %v331 = vadd.s32 %v321, 4294967272
          %v332 = vperm.slane %v310, %v331
          %vm333 = vcmask 261312
          %v334 = vsel %vm333, %v332, %v330
          %vm335 = vcmask 261120
          %v336 = vsel %vm335, %v334, 0
          %338 = vmatpush.msra.mxu0 0.0
          %339 = vmatpush.msra.mxu0 0.0
          %340 = vmatpush.msra.mxu0 0.0
          %341 = vmatpush.msra.mxu0 0.0
          %342 = vmatpush.msra.mxu0 0.0
          %343 = vmatpush.msra.mxu0 0.0
          %344 = vmatpush.msra.mxu0 0.0
          %345 = vmatpush.msra.mxu0 0.0
          %346 = vmatpush.msra.mxu0 0.0
          %347 = vmatpush.msra.mxu0 0.0
          %348 = vmatpush.msra.mxu0 0.0
          %349 = vmatpush.msra.mxu0 0.0
          %350 = vmatpush.msra.mxu0 %v314
          %351 = vmatpush.msra.mxu0 %v313
          %352 = vmatpush.msra.mxu0 %v312
          %353 = vmatpush.msra.mxu0 %v311
          %354 = vmatmul.f32.gmra.mxu0 %v336
          %v355 = vpop.f32.mrf.mxu0
          %v356 = vadd.f32 %v315, %v355
          %357 = vdwg.mxu0
          %v358 = vmax.f32 %v356, 0.0
          %v359 = vld [vmem:[%s3] sm:$0xff]
          %v360 = vld [vmem:[%s4] sm:$0x1]
          %vm361 = vcmask 64512
          %v363 = vsel %vm361, %v358, 0
          %365 = vmatpush.msra.mxu0 0.0
          %366 = vmatpush.msra.mxu0 0.0
          %367 = vmatpush.msra.mxu0 0.0
          %368 = vmatpush.msra.mxu0 0.0
          %369 = vmatpush.msra.mxu0 0.0
          %370 = vmatpush.msra.mxu0 0.0
          %371 = vmatpush.msra.mxu0 0.0
          %372 = vmatpush.msra.mxu0 0.0
          %373 = vmatpush.msra.mxu0 0.0
          %374 = vmatpush.msra.mxu0 0.0
          %375 = vmatpush.msra.mxu0 0.0
          %376 = vmatpush.msra.mxu0 0.0
          %377 = vmatpush.msra.mxu0 0.0
          %378 = vmatpush.msra.mxu0 0.0
          %379 = vmatpush.msra.mxu0 0.0
          %380 = vmatpush.msra.mxu0 %v359
          %381 = vmatmul.f32.gmra.mxu0 %v363
          %v382 = vpop.f32.mrf.mxu0
          %v383 = vadd.f32 %v360, %v382
          %384 = vdwg.mxu0
          %v385 = vxor.u32 %v383, 2147483648
          %v386 = vmul.f32 %v385, 1.442695
          %v387 = vpow.pop %v386
          %v388 = vadd.f32 %v387, 1.0
          %v389 = vrcp.pop %v388
          %v390 = vmul.f32 %v388, %v389
          %v391 = vsub.f32 1.0, %v390
          %v392 = vmul.f32 %v389, %v391
          %v393 = vadd.f32 %v389, %v392
          %vm394 = vweird.f32 %v388
          %vm395 = vweird.f32 %v389
          %vm396 = vmor %vm394, %vm395
          %v397 = vsel %vm396, %v389, %v393
          %v398 = vand.u32 2147483647, %v388
          %vm399 = vcmp.eq.f32.partialorder %v398, 8.507059e+37
          %v400 = vand.u32 %v388, 2147483648
          %v401 = vor.u32 1.1754944e-38, %v400
          %v402 = vsel %vm399, %v401, %v397
          %v403 = vmul.f32 1.0, %v402
          %vm404 = vcmask 253952
          %405 = vst.msk [vmem:[%s258] sm:$0x1] %vm404, %v403
        $region56: #{tpu_custom_call.1} parent=39 // pred_fallthru
          _
        %s406 = sand.u32 %s154, 1
        %s407 = scalar_lea.sflag [#allocation5], %s406
        %s408 = sand.u32 %s154, 1
        %s409 = scalar_lea.vmem [#allocation6], %s408
        // Predicated region
        $region57: #{tpu_custom_call.1} parent=39 // pred_check
          %p410 = pneg %p164
        $region58: #{tpu_custom_call.1} parent=39 // pred_check_branch
          %412 = sbr.rel (%p410) target = $region60
        $region59: #{tpu_custom_call.1} parent=39 // pred_region
          %414 = vsyncadd %s407, 0
          %s415 = scalar_lea.hbm %s5, %s26
          %s417 = sshll.u32 %s409, 4
          %s418 = int_to_ptr.vmem [resolvable:$true] %s417
          %s419 = sshll.u32 %s415, 4
          %s420 = int_to_ptr.hbm [resolvable:$true] %s419
          %422 = dma.vmem_to_hbm [thread:$0]  %s418, 16, %s420, %s407
        $region60: #{tpu_custom_call.1} parent=39 // pred_fallthru
          _
      $region40: #{tpu_custom_call.1} parent=5 // pred_fallthru
        _
      %p423 = scmp.le.s32.totalorder 2, %s17
      // Predicated region
      $region61: #{tpu_custom_call.1} parent=5 // pred_check
        %p424 = pneg %p423
      $region62: #{tpu_custom_call.1} parent=5 // pred_check_branch
        %426 = sbr.rel (%p424) target = $region64
      $region63: #{tpu_custom_call.1} parent=5 // pred_region
        %s427 = ssub.s32 %s17, 2
        // Predicated region
        $region65: #{tpu_custom_call.1} parent=63 // pred_check
          %p428 = pneg %p170
        $region66: #{tpu_custom_call.1} parent=63 // pred_check_branch
          %430 = sbr.rel (%p428) target = $region68
        $region67: #{tpu_custom_call.1} parent=63 // pred_region
          %s431 = sand.u32 %s155, 1
          %s432 = scalar_lea.sflag [#allocation5], %s431
          %s433 = sand.u32 %s155, 1
          %s434 = scalar_lea.vmem [#allocation6], %s433
          %436 = dma.done %s432, 16
        $region68: #{tpu_custom_call.1} parent=63 // pred_fallthru
          _
      $region64: #{tpu_custom_call.1} parent=5 // pred_fallthru
        _
    $region6: #{tpu_custom_call.1} parent=1 // loop_footer
      %s21 = sadd.s32 1, %s17
    $region7: #{tpu_custom_call.1} parent=1 // loop_footer_branch
      %16 = sbr.rel target = $region3
    $region8: #{tpu_custom_call.1} parent=1 // loop_exit
      _
    %437 = vsyncpa [#allocation4], 1
    %s438 = scalar_lea.sflag [#allocation4], 1
    %439 = vsyncpa %s438, 1
    %440 = vsyncpa [#allocation5], 1
    %s441 = scalar_lea.sflag [#allocation5], 1
    %442 = vsyncpa %s441, 1

</llo_original>
